<compile_context>
chip_gen: v7x
topology: tpu7x:2x2x1
jax: 0.10.0
libtpu: 0.0.40
codegen_flags: <defaults>
</compile_context>

<pallas_src>
import functools
import math

import jax
import jax.numpy as jnp
from jax import lax
from jax.experimental import pallas as pl
from jax.experimental.pallas import tpu as pltpu

_LN_EPS = 1e-5
_INV_SQRT2 = 0.7071067811865475        # hoisted python float


def _round_up(x, m):
    return (x + m - 1) // m * m


@functools.lru_cache(maxsize=None)
def _vmem_limit_bytes():
    """~75% of physical per-core VMEM, clamped: 96 MiB on v5e/v6e (128 MiB
    physical), 48 MiB on v7x (64 MiB physical)."""
    cap = 128 * 1024 * 1024
    try:
        cap = int(getattr(pltpu.get_tpu_info(), "vmem_capacity_bytes", cap))
    except Exception:
        pass
    return max(32 << 20, min(int(cap * 0.75), 112 << 20))


@functools.lru_cache(maxsize=None)
def _default_tile_rows():
    # Bigger row tiles on 128-MiB parts (v5e/v6e); keep v7x (64 MiB) modest.
    return 512 if _vmem_limit_bytes() >= (80 << 20) else 256


def _compiler_params(n_axes):
    return pltpu.CompilerParams(
        dimension_semantics=("parallel",) * n_axes,
        vmem_limit_bytes=_vmem_limit_bytes(),
    )


def _const_spec(block_shape):
    """BlockSpec for grid-invariant operands (weights / biases / LN params):
    single-buffered so resident weights are counted once in VMEM."""
    index_map = lambda i: (0,) * len(block_shape)
    try:
        return pl.BlockSpec(block_shape, index_map, pipeline_mode=pl.Buffered(1))
    except Exception:   # older jax without pipeline_mode on BlockSpec
        return pl.BlockSpec(block_shape, index_map)


def _row_tiling(m, tile_rows):
    """Row-tile size and padded row count.  Keeps >= 2 grid steps when
    possible so both v7x TensorCores get work on the 'parallel' row axis."""
    tm = min(tile_rows, _round_up(m, 8))
    if _round_up(m, tm) // tm < 2 and tm >= 16:
        tm = _round_up(tm // 2, 8)
    return tm, _round_up(m, tm)


def _layernorm(x, gamma, beta):
    mu = jnp.mean(x, axis=-1, keepdims=True)
    var = jnp.mean(jnp.square(x - mu), axis=-1, keepdims=True)
    return (x - mu) * lax.rsqrt(var + _LN_EPS) * gamma + beta


# ----------------------------------------------------------------------------
# Kernel 1: norm1 + qkv projection (row tiled, bf16 output)
# ----------------------------------------------------------------------------
def _norm1_qkv_kernel(x_ref, g_ref, b_ref, wqkv_ref, o_ref):
    x = x_ref[...].astype(jnp.float32)                      # (tm, C)
    xn = _layernorm(x, g_ref[...], b_ref[...])
    # qkv_bias=False (Block default). bf16 operands, f32 MXU accumulation.
    qkv = jnp.dot(xn.astype(wqkv_ref.dtype), wqkv_ref[...],
                  preferred_element_type=jnp.float32)       # (tm, 3C)
    o_ref[...] = qkv.astype(o_ref.dtype)                    # bf16 store


def _norm1_qkv(x2d, g1, b1, wqkv_bf16, *, tile_rows):
    m, c = x2d.shape
    c3 = wqkv_bf16.shape[1]
    tm, m_pad = _row_tiling(m, tile_rows)
    if m_pad != m:
        x2d = jnp.pad(x2d, ((0, m_pad - m), (0, 0)))
    out = pl.pallas_call(
        _norm1_qkv_kernel,
        out_shape=jax.ShapeDtypeStruct((m_pad, c3), jnp.bfloat16),
        grid_spec=pltpu.PrefetchScalarGridSpec(
            num_scalar_prefetch=0,
            grid=(m_pad // tm,),
            in_specs=[
                pl.BlockSpec((tm, c), lambda i: (i, 0)),    # x rows
                _const_spec((1, c)),                        # gamma1
                _const_spec((1, c)),                        # beta1
                _const_spec((c, c3)),                       # Wqkv (bf16 resident)
            ],
            out_specs=pl.BlockSpec((tm, c3), lambda i: (i, 0)),
        ),
        compiler_params=_compiler_params(1),
    )(x2d, g1, b1, wqkv_bf16)
    return out[:m]


# ----------------------------------------------------------------------------
# Kernel 2: softmax attention core.  One batch element (all H heads) per grid
# step; q/k/v and heads are sliced from the lane-dense (1, N, 3C) qkv block
# inside the kernel, output is a lane-dense (1, N, C) block (merged heads).
# ----------------------------------------------------------------------------
def _attn_core_kernel(qkv_ref, o_ref, *, num_heads, scale):
    _, n, c3 = qkv_ref.shape
    c = c3 // 3
    d = c // num_heads
    for h in range(num_heads):                              # static unroll over heads
        lo = h * d
        # fold 1/sqrt(D) into q (N*D mults instead of N*N on the scores)
        qh = (qkv_ref[0, :, lo:lo + d].astype(jnp.float32) * scale
              ).astype(jnp.bfloat16)                        # (N, D)
        kh = qkv_ref[0, :, c + lo:c + lo + d]               # (N, D) bf16
        vh = qkv_ref[0, :, 2 * c + lo:2 * c + lo + d]       # (N, D) bf16
        s = lax.dot_general(qh, kh, (((1,), (1,)), ((), ())),
                            preferred_element_type=jnp.float32)   # (N, N)
        s_max = jnp.max(s, axis=-1, keepdims=True)
        p = jnp.exp(s - s_max)
        attn = p * pl.reciprocal(jnp.sum(p, axis=-1, keepdims=True),
                                 approx=True)               # divide on the EUP
        av = jnp.dot(attn.astype(jnp.bfloat16), vh,
                     preferred_element_type=jnp.float32)    # (N, D)
        o_ref[0, :, lo:lo + d] = av.astype(o_ref.dtype)     # VMEM-side slice store


def _attn_core(qkv3, *, num_heads, scale):
    b, n, c3 = qkv3.shape
    c = c3 // 3
    kernel = functools.partial(_attn_core_kernel, num_heads=num_heads, scale=scale)
    return pl.pallas_call(
        kernel,
        out_shape=jax.ShapeDtypeStruct((b, n, c), jnp.bfloat16),
        grid_spec=pltpu.PrefetchScalarGridSpec(
            num_scalar_prefetch=0,
            grid=(b,),
            in_specs=[pl.BlockSpec((1, n, c3), lambda i: (i, 0, 0))],
            out_specs=pl.BlockSpec((1, n, c), lambda i: (i, 0, 0)),
        ),
        compiler_params=_compiler_params(1),
    )(qkv3)


# ----------------------------------------------------------------------------
# Kernel 3: attn-proj + residual + norm2 + fc1 + GELU + fc2 + residual
# ----------------------------------------------------------------------------
def _proj_residual_mlp_kernel(a_ref, x_ref, wp_ref, bp_ref, g2_ref, b2_ref,
                              w1_ref, b1_ref, w2_ref, b2f_ref, o_ref):
    a = a_ref[...]                                          # (tm, C) bf16 attn out
    x = x_ref[...].astype(jnp.float32)                      # (tm, C) block input
    # attention output projection + first residual (drop_path = identity)
    y = jnp.dot(a, wp_ref[...], preferred_element_type=jnp.float32) + bp_ref[...]
    x1 = x + y
    # norm2 + MLP
    xn = _layernorm(x1, g2_ref[...], b2_ref[...])
    h = jnp.dot(xn.astype(w1_ref.dtype), w1_ref[...],
                preferred_element_type=jnp.float32) + b1_ref[...]
    h = 0.5 * h * (1.0 + lax.erf(h * _INV_SQRT2))           # exact (erf) GELU
    m = jnp.dot(h.astype(w2_ref.dtype), w2_ref[...],
                preferred_element_type=jnp.float32) + b2f_ref[...]
    # second residual
    o_ref[...] = (x1 + m).astype(o_ref.dtype)


def _proj_mlp(attn2d, x2d, p, *, tile_rows):
    m, c = x2d.shape
    hm = p["w1"].shape[1]
    tm, m_pad = _row_tiling(m, tile_rows)
    if m_pad != m:
        pad = ((0, m_pad - m), (0, 0))
        attn2d = jnp.pad(attn2d, pad)
        x2d = jnp.pad(x2d, pad)
    out = pl.pallas_call(
        _proj_residual_mlp_kernel,
        out_shape=jax.ShapeDtypeStruct((m_pad, c), jnp.float32),
        grid_spec=pltpu.PrefetchScalarGridSpec(
            num_scalar_prefetch=0,
            grid=(m_pad // tm,),
            in_specs=[
                pl.BlockSpec((tm, c), lambda i: (i, 0)),    # attn rows (bf16)
                pl.BlockSpec((tm, c), lambda i: (i, 0)),    # residual x rows
                _const_spec((c, c)),                        # Wproj (bf16 resident)
                _const_spec((1, c)),                        # bproj
                _const_spec((1, c)),                        # gamma2
                _const_spec((1, c)),                        # beta2
                _const_spec((c, hm)),                       # W1 (bf16 resident)
                _const_spec((1, hm)),                       # b1
                _const_spec((hm, c)),                       # W2 (bf16 resident)
                _const_spec((1, c)),                        # b2
            ],
            out_specs=pl.BlockSpec((tm, c), lambda i: (i, 0)),
        ),
        compiler_params=_compiler_params(1),
    )(attn2d, x2d, p["wproj"], p["bproj"], p["g2"], p["b2"],
      p["w1"], p["b1f"], p["w2"], p["b2f"])
    return out[:m]


# ----------------------------------------------------------------------------
# One-time (init-time) parameter preparation: bf16 weights, row-shaped biases
# ----------------------------------------------------------------------------
def prepare_block_params(params):
    c = params["g1"].shape[0]
    hm = params["w1"].shape[1]
    f32 = jnp.float32
    return {
        "wqkv": params["wqkv"].astype(jnp.bfloat16),
        "wproj": params["wproj"].astype(jnp.bfloat16),
        "w1": params["w1"].astype(jnp.bfloat16),
        "w2": params["w2"].astype(jnp.bfloat16),
        "g1": params["g1"].reshape(1, c).astype(f32),
        "b1": params["b1"].reshape(1, c).astype(f32),
        "g2": params["g2"].reshape(1, c).astype(f32),
        "b2": params["b2"].reshape(1, c).astype(f32),
        "bproj": params["bproj"].reshape(1, c).astype(f32),
        "b1f": params["b1f"].reshape(1, hm).astype(f32),
        "b2f": params["b2f"].reshape(1, c).astype(f32),
    }


# ----------------------------------------------------------------------------
# Full Block forward
# ----------------------------------------------------------------------------
def vit_block_forward(x, prepared, *, num_heads, tile_rows=None):
    """x: (B, N, C) float32; `prepared` from prepare_block_params()."""
    B, N, C = x.shape
    D = C // num_heads
    scale = D ** -0.5
    if tile_rows is None:
        tile_rows = _default_tile_rows()

    x2d = x.reshape(B * N, C)

    # 1) norm1 + qkv projection (row tiled, bf16 intermediate)
    qkv = _norm1_qkv(x2d, prepared["g1"], prepared["b1"], prepared["wqkv"],
                     tile_rows=tile_rows)                   # (B*N, 3C) bf16
    qkv3 = qkv.reshape(B, N, 3 * C)                         # free metadata reshape

    # 2) softmax attention, all heads of one batch element per grid step;
    #    output already in merged-head (B, N, C) layout (no XLA transposes)
    av = _attn_core(qkv3, num_heads=num_heads, scale=scale) # (B, N, C) bf16
    av2d = av.reshape(B * N, C)                             # free metadata reshape

    # 3) proj + residual + norm2 + MLP + residual (row tiled, weights resident)
    out = _proj_mlp(av2d, x2d, prepared, tile_rows=tile_rows)
    return out.reshape(B, N, C)


# ----------------------------------------------------------------------------
# Pure-JAX reference (matches the PyTorch Block forward, eval mode)
# ----------------------------------------------------------------------------
def _block_reference(x, params, *, num_heads, matmul_dtype=jnp.float32,
                     store_dtype=jnp.float32):
    """matmul_dtype / store_dtype = bf16 mirrors the kernel's dtype policy
    (bf16 MXU operands + bf16 inter-kernel intermediates, f32 accumulation)."""
    B, N, C = x.shape
    D = C // num_heads
    scale = D ** -0.5
    md = matmul_dtype

    def mm(a, w):
        return jnp.dot(a.astype(md), w.astype(md),
                       preferred_element_type=jnp.float32)

    xn = _layernorm(x, params["g1"], params["b1"])
    qkv = mm(xn, params["wqkv"]).astype(store_dtype).astype(jnp.float32)
    qkv = qkv.reshape(B, N, 3, num_heads, D).transpose(2, 0, 3, 1, 4)
    q, k, v = qkv[0] * scale, qkv[1], qkv[2]
    s = jnp.einsum("bhnd,bhmd->bhnm", q.astype(md), k.astype(md),
                   preferred_element_type=jnp.float32)
    attn = jax.nn.softmax(s, axis=-1)
    av = jnp.einsum("bhnm,bhmd->bhnd", attn.astype(md), v.astype(md),
                    preferred_element_type=jnp.float32)
    av = av.transpose(0, 2, 1, 3).reshape(B, N, C).astype(store_dtype)
    x1 = x + mm(av, params["wproj"]) + params["bproj"]
    xn2 = _layernorm(x1, params["g2"], params["b2"])
    h = mm(xn2, params["w1"]) + params["b1f"]
    h = 0.5 * h * (1.0 + lax.erf(h * _INV_SQRT2))
    return x1 + mm(h, params["w2"]) + params["b2f"]


if __name__ == "__main__":
    # Small but lane-friendly shapes (feature dims are multiples of 128).
    B, N, C = 2, 16, 128
    num_heads = 4
    mlp_hidden = int(C * 4.0)

    key = jax.random.PRNGKey(0)
    ks = jax.random.split(key, 12)

    x = jax.random.normal(ks[0], (B, N, C), dtype=jnp.float32)

    def lin_w(k, fan_in, fan_out):
        lim = 1.0 / math.sqrt(fan_in)
        return jax.random.uniform(k, (fan_in, fan_out), minval=-lim, maxval=lim,
                                  dtype=jnp.float32)

    def lin_b(k, fan_in, fan_out):
        lim = 1.0 / math.sqrt(fan_in)
        return jax.random.uniform(k, (fan_out,), minval=-lim, maxval=lim,
                                  dtype=jnp.float32)

    params = {
        # norm1 / norm2 (perturbed from torch's 1/0 init to exercise the affine path)
        "g1": 1.0 + 0.1 * jax.random.normal(ks[1], (C,), dtype=jnp.float32),
        "b1": 0.1 * jax.random.normal(ks[2], (C,), dtype=jnp.float32),
        "g2": 1.0 + 0.1 * jax.random.normal(ks[3], (C,), dtype=jnp.float32),
        "b2": 0.1 * jax.random.normal(ks[4], (C,), dtype=jnp.float32),
        # attention: qkv (bias=False, Block default), proj (with bias)
        "wqkv": lin_w(ks[5], C, 3 * C),
        "wproj": lin_w(ks[6], C, C),
        "bproj": lin_b(ks[7], C, C),
        # mlp
        "w1": lin_w(ks[8], C, mlp_hidden),
        "b1f": lin_b(ks[9], C, mlp_hidden),
        "w2": lin_w(ks[10], mlp_hidden, C),
        "b2f": lin_b(ks[11], mlp_hidden, C),
    }

    prepared = prepare_block_params(params)   # init-time: bf16 weight casts hoisted

    y = vit_block_forward(x, prepared, num_heads=num_heads)
    y = jax.block_until_ready(y)
    assert y.shape == (B, N, C)

    # Check vs a reference mirroring the kernel's bf16-operand / bf16-intermediate
    # policy (tolerance covers the approx EUP reciprocal in the softmax).
    y_matched = _block_reference(x, params, num_heads=num_heads,
                                 matmul_dtype=jnp.bfloat16,
                                 store_dtype=jnp.bfloat16)
    assert jnp.allclose(y, y_matched, atol=1e-2, rtol=1e-2), \
        "mismatch vs bf16-matched reference"

    # Loose check vs the pure-f32 torch-semantics reference (documents the
    # bf16 precision policy; dropout / drop_path are identities in eval).
    y_f32 = _block_reference(x, params, num_heads=num_heads)
    assert jnp.allclose(y, y_f32, atol=1e-1, rtol=1e-1), \
        "mismatch vs f32 reference"

    print("KERNEL_OK")
</pallas_src>

<mosaic_0001>
module attributes {stable_mosaic.version = 11 : i64} {
  func.func @_norm1_qkv_kernel(%arg0: i32, %arg1: memref<16x128xf32, #tpu.memory_space<vmem>>, %arg2: memref<1x128xf32, #tpu.memory_space<vmem>>, %arg3: memref<1x128xf32, #tpu.memory_space<vmem>>, %arg4: memref<128x384xbf16, #tpu.memory_space<vmem>>, %arg5: memref<16x384xbf16, #tpu.memory_space<vmem>>) attributes {dimension_semantics = [#tpu.dimension_semantics<parallel>], iteration_bounds = array<i64: 2>, scalar_prefetch = 0 : i64, scratch_operands = 0 : i64, tpu.core_type = #tpu.core_type<tc>, window_params = [{transform_indices = @transform_0, window_bounds = array<i64: 16, 128>}, {pipeline_mode = #tpu.pipeline_mode<synchronous>, transform_indices = @transform_1, window_bounds = array<i64: 1, 128>}, {pipeline_mode = #tpu.pipeline_mode<synchronous>, transform_indices = @transform_2, window_bounds = array<i64: 1, 128>}, {pipeline_mode = #tpu.pipeline_mode<synchronous>, transform_indices = @transform_3, window_bounds = array<i64: 128, 384>}, {transform_indices = @transform_4, window_bounds = array<i64: 16, 384>}]} {
    %c0 = arith.constant 0 : index
    %c0_0 = arith.constant 0 : index
    %0 = vector.load %arg1[%c0, %c0_0] : memref<16x128xf32, #tpu.memory_space<vmem>>, vector<16x128xf32>
    %c0_1 = arith.constant 0 : index
    %c0_2 = arith.constant 0 : index
    %1 = vector.load %arg2[%c0_1, %c0_2] : memref<1x128xf32, #tpu.memory_space<vmem>>, vector<1x128xf32>
    %c0_3 = arith.constant 0 : index
    %c0_4 = arith.constant 0 : index
    %2 = vector.load %arg3[%c0_3, %c0_4] : memref<1x128xf32, #tpu.memory_space<vmem>>, vector<1x128xf32>
    %cst = arith.constant dense<0.000000e+00> : vector<16xf32>
    %3 = vector.multi_reduction <add>, %0, %cst [1] : vector<16x128xf32> to vector<16xf32>
    %4 = vector.shape_cast %3 : vector<16xf32> to vector<16x1xf32>
    %cst_5 = arith.constant 1.280000e+02 : f32
    %5 = vector.broadcast %cst_5 : f32 to vector<16x1xf32>
    %6 = arith.divf %4, %5 : vector<16x1xf32>
    %7 = vector.broadcast %6 : vector<16x1xf32> to vector<16x128xf32>
    %8 = arith.subf %0, %7 : vector<16x128xf32>
    %9 = arith.mulf %8, %8 : vector<16x128xf32>
    %cst_6 = arith.constant dense<0.000000e+00> : vector<16xf32>
    %10 = vector.multi_reduction <add>, %9, %cst_6 [1] : vector<16x128xf32> to vector<16xf32>
    %11 = vector.shape_cast %10 : vector<16xf32> to vector<16x1xf32>
    %cst_7 = arith.constant 1.280000e+02 : f32
    %12 = vector.broadcast %cst_7 : f32 to vector<16x1xf32>
    %13 = arith.divf %11, %12 : vector<16x1xf32>
    %14 = vector.broadcast %6 : vector<16x1xf32> to vector<16x128xf32>
    %15 = arith.subf %0, %14 : vector<16x128xf32>
    %cst_8 = arith.constant 9.99999974E-6 : f32
    %16 = vector.broadcast %cst_8 : f32 to vector<16x1xf32>
    %17 = arith.addf %13, %16 : vector<16x1xf32>
    %18 = math.rsqrt %17 : vector<16x1xf32>
    %19 = vector.broadcast %18 : vector<16x1xf32> to vector<16x128xf32>
    %20 = arith.mulf %15, %19 : vector<16x128xf32>
    %21 = vector.broadcast %1 : vector<1x128xf32> to vector<16x128xf32>
    %22 = arith.mulf %20, %21 : vector<16x128xf32>
    %23 = vector.broadcast %2 : vector<1x128xf32> to vector<16x128xf32>
    %24 = arith.addf %22, %23 : vector<16x128xf32>
    %25 = arith.truncf %24 : vector<16x128xf32> to vector<16x128xbf16>
    %c0_9 = arith.constant 0 : index
    %c0_10 = arith.constant 0 : index
    %26 = vector.load %arg4[%c0_9, %c0_10] : memref<128x384xbf16, #tpu.memory_space<vmem>>, vector<128x384xbf16>
    %cst_11 = arith.constant dense<0.000000e+00> : vector<16x384xf32>
    %27 = tpu.matmul %25, %26, %cst_11 {dimension_numbers = #tpu.dot_dimension_numbers<[1], [0], [0], [1], [0, 0, 1, 1], [], []>} : vector<16x128xbf16>, vector<128x384xbf16>, vector<16x384xf32> -> vector<16x384xf32>
    %28 = arith.truncf %27 : vector<16x384xf32> to vector<16x384xbf16>
    %c0_12 = arith.constant 0 : index
    %c0_13 = arith.constant 0 : index
    %29 = vector.load %arg5[%c0_12, %c0_13] : memref<16x384xbf16, #tpu.memory_space<vmem>>, vector<16x384xbf16>
    tpu.vector_store %arg5[%c0_12, %c0_13], %28 {strides = array<i32>} : memref<16x384xbf16, #tpu.memory_space<vmem>>, vector<16x384xbf16>,
    return
  }
  func.func @transform_0(%arg0: i32) -> (i32, i32) {
    %c0_i32 = arith.constant 0 : i32
    %c0_i32_0 = arith.constant 0 : i32
    return %arg0, %c0_i32 : i32, i32
  }
  func.func @transform_1(%arg0: i32) -> (i32, i32) {
    %c0_i32 = arith.constant 0 : i32
    %c0_i32_0 = arith.constant 0 : i32
    %c0_i32_1 = arith.constant 0 : i32
    return %c0_i32, %c0_i32_0 : i32, i32
  }
  func.func @transform_2(%arg0: i32) -> (i32, i32) {
    %c0_i32 = arith.constant 0 : i32
    %c0_i32_0 = arith.constant 0 : i32
    %c0_i32_1 = arith.constant 0 : i32
    return %c0_i32, %c0_i32_0 : i32, i32
  }
  func.func @transform_3(%arg0: i32) -> (i32, i32) {
    %c0_i32 = arith.constant 0 : i32
    %c0_i32_0 = arith.constant 0 : i32
    %c0_i32_1 = arith.constant 0 : i32
    return %c0_i32, %c0_i32_0 : i32, i32
  }
  func.func @transform_4(%arg0: i32) -> (i32, i32) {
    %c0_i32 = arith.constant 0 : i32
    %c0_i32_0 = arith.constant 0 : i32
    return %arg0, %c0_i32 : i32, i32
  }
}

</mosaic_0001>

<llo_original>
// kernel: tpu_custom_call.1
$region0: #{tpu_custom_call.1}
  #allocation0 [shape = 'u32[]', space=smem, size = 0x4, offset = 0x4, fixed_abs, tag = 'smem constant byte address 0x4 - core index']
  #allocation1 [shape = 'u32[144,128]{1,0:T(1,128)}', space=vmem, size = 0x12000, scoped, tag = 'internal scratch']
  %s0 = inlined_call_operand.hbm [shape: f32[32,128], index: 0, kind: input, shape index: {}]
  %s1 = inlined_call_operand.hbm [shape: f32[1,128], index: 1, kind: input, shape index: {}]
  %s2 = inlined_call_operand.hbm [shape: f32[1,128], index: 2, kind: input, shape index: {}]
  %s3 = inlined_call_operand.hbm [shape: bf16[128,384], index: 3, kind: input, shape index: {}]
  %s4 = inlined_call_operand.hbm [shape: bf16[32,384], index: 4, kind: output, shape index: {}]
  %s5 = sld [smem:[#allocation0]]
  $region65: #{tpu_custom_call.1} parent=0
    _
  %s7 = ssub.s32 1, %s5
  %s8 = scalar_select 0, %s7, %s5
  $region1: #{tpu_custom_call.1} parent=0
    #allocation2 [shape = 'u8[16384]{0}', space=vmem, size = 0x4000, scoped, tag = 'input window, operand 0']
    #allocation3 [shape = 's32[2]{0}', space=sflag, size = 0x8, scoped, tag = 'scoped memory for tpu_custom_call.1']
    #allocation4 [shape = 's32[2]{0}', space=sflag, size = 0x8, scoped, tag = 'scoped memory for tpu_custom_call.1']
    #allocation5 [shape = 'u8[512]{0}', space=vmem, size = 0x400, scoped, tag = 'input window, operand 1, single buffered']
    #allocation6 [shape = 's32[1]{0}', space=sflag, size = 0x4, scoped, tag = 'scoped memory for tpu_custom_call.1']
    #allocation7 [shape = 'u8[512]{0}', space=vmem, size = 0x400, scoped, tag = 'input window, operand 2, single buffered']
    #allocation8 [shape = 'u8[98304]{0}', space=vmem, size = 0x18000, scoped, tag = 'input window, operand 3, single buffered']
    #allocation9 [shape = 's32[1]{0}', space=sflag, size = 0x4, scoped, tag = 'scoped memory for tpu_custom_call.1']
    #allocation10 [shape = 'u8[24576]{0}', space=vmem, size = 0x6000, scoped, tag = 'output window, operand 0']
    %9 = vsyncpa [#allocation3], 0
    %s10 = scalar_lea.sflag [#allocation3], 1
    %11 = vsyncpa %s10, 0
    %12 = vsyncpa [#allocation6], 0
    %13 = vsyncpa [#allocation9], 0
    %14 = vsyncpa [#allocation4], 0
    %s15 = scalar_lea.sflag [#allocation4], 1
    %16 = vsyncpa %s15, 0
    loop: start=0, step=1, limit=4
    $region2: #{tpu_custom_call.1} parent=1 // loop_pre_header
      _
    $region3: #{tpu_custom_call.1} parent=1 // loop_header
      %s18 = sphi 0, %s22
      %p19 = scmp.ge.s32.totalorder %s18, 4
      %s28 = sphi 0, %s30
      %s31 = sphi 0, %s28
      %s32 = sphi 0, %s31
      %s48 = sphi 0, %s32
      %s52 = sphi 0, %s52
      %s54 = sphi 0, %s52
      %s55 = sphi 0, %s54
      %s69 = sphi 0, %s55
      %s73 = sphi 0, %s73
      %s75 = sphi 0, %s73
      %s76 = sphi 0, %s75
      %s90 = sphi 0, %s76
      %s94 = sphi 0, %s94
      %s96 = sphi 0, %s94
      %s97 = sphi 0, %s96
      %s111 = sphi 0, %s97
      %s117 = sphi 0, %s119
      %s120 = sphi 0, %s117
      %s121 = sphi 0, %s120
      %s137 = sphi 0, %s121
    $region4: #{tpu_custom_call.1} parent=1 // loop_header_branch
      %21 = sbr.rel (%p19) target = $region8
    $region5: #{tpu_custom_call.1} parent=1 // loop_body
      %s23 = ssub.s32 %s18, 1
      %s24 = ssub.s32 %s18, 2
      %s25 = sadd.s32 %s18, 1
      %s26 = ssub.s32 %s18, %s25
      %p27 = scmp.eq.s32.totalorder %s26, 0
      %s29 = sadd.s32 %s28, 1
      %s30 = scalar_select %p27, %s28, %s29
      %p33 = pneg %p27
      %p34 = scmp.eq.s32.totalorder %s18, 1
      %p35 = por %p33, %p34
      %p36 = scmp.ne.s32.totalorder %s28, %s31
      %p37 = scmp.eq.s32.totalorder %s18, 0
      %p38 = por %p36, %p37
      %p39 = scmp.ne.s32.totalorder %s28, %s31
      %p40 = scmp.eq.s32.totalorder %s23, 1
      %p41 = por %p39, %p40
      %p42 = scmp.ne.s32.totalorder %s31, %s32
      %p43 = scmp.eq.s32.totalorder %s23, 0
      %p44 = por %p42, %p43
      %p45 = scmp.ne.s32.totalorder %s31, %s32
      %p46 = scmp.eq.s32.totalorder %s24, 1
      %p47 = por %p45, %p46
      %p49 = scmp.ne.s32.totalorder %s32, %s48
      %p50 = scmp.eq.s32.totalorder %s24, 0
      %p51 = por %p49, %p50
      %s53 = sadd.s32 %s52, 1
      %p56 = scmp.eq.s32.totalorder %s18, 1
      %p57 = scmp.ne.s32.totalorder %s52, %s54
      %p58 = scmp.eq.s32.totalorder %s18, 0
      %p59 = por %p57, %p58
      %p60 = scmp.ne.s32.totalorder %s52, %s54
      %p61 = scmp.eq.s32.totalorder %s23, 1
      %p62 = por %p60, %p61
      %p63 = scmp.ne.s32.totalorder %s54, %s55
      %p64 = scmp.eq.s32.totalorder %s23, 0
      %p65 = por %p63, %p64
      %p66 = scmp.ne.s32.totalorder %s54, %s55
      %p67 = scmp.eq.s32.totalorder %s24, 1
      %p68 = por %p66, %p67
      %p70 = scmp.ne.s32.totalorder %s55, %s69
      %p71 = scmp.eq.s32.totalorder %s24, 0
      %p72 = por %p70, %p71
      %s74 = sadd.s32 %s73, 1
      %p77 = scmp.eq.s32.totalorder %s18, 1
      %p78 = scmp.ne.s32.totalorder %s73, %s75
      %p79 = scmp.eq.s32.totalorder %s18, 0
      %p80 = por %p78, %p79
      %p81 = scmp.ne.s32.totalorder %s73, %s75
      %p82 = scmp.eq.s32.totalorder %s23, 1
      %p83 = por %p81, %p82
      %p84 = scmp.ne.s32.totalorder %s75, %s76
      %p85 = scmp.eq.s32.totalorder %s23, 0
      %p86 = por %p84, %p85
      %p87 = scmp.ne.s32.totalorder %s75, %s76
      %p88 = scmp.eq.s32.totalorder %s24, 1
      %p89 = por %p87, %p88
      %p91 = scmp.ne.s32.totalorder %s76, %s90
      %p92 = scmp.eq.s32.totalorder %s24, 0
      %p93 = por %p91, %p92
      %s95 = sadd.s32 %s94, 1
      %p98 = scmp.eq.s32.totalorder %s18, 1
      %p99 = scmp.ne.s32.totalorder %s94, %s96
      %p100 = scmp.eq.s32.totalorder %s18, 0
      %p101 = por %p99, %p100
      %p102 = scmp.ne.s32.totalorder %s94, %s96
      %p103 = scmp.eq.s32.totalorder %s23, 1
      %p104 = por %p102, %p103
      %p105 = scmp.ne.s32.totalorder %s96, %s97
      %p106 = scmp.eq.s32.totalorder %s23, 0
      %p107 = por %p105, %p106
      %p108 = scmp.ne.s32.totalorder %s96, %s97
      %p109 = scmp.eq.s32.totalorder %s24, 1
      %p110 = por %p108, %p109
      %p112 = scmp.ne.s32.totalorder %s97, %s111
      %p113 = scmp.eq.s32.totalorder %s24, 0
      %p114 = por %p112, %p113
      %s115 = ssub.s32 %s18, %s25
      %p116 = scmp.eq.s32.totalorder %s115, 0
      %s118 = sadd.s32 %s117, 1
      %s119 = scalar_select %p116, %s117, %s118
      %p122 = pneg %p116
      %p123 = scmp.eq.s32.totalorder %s18, 1
      %p124 = por %p122, %p123
      %p125 = scmp.ne.s32.totalorder %s117, %s120
      %p126 = scmp.eq.s32.totalorder %s18, 0
      %p127 = por %p125, %p126
      %p128 = scmp.ne.s32.totalorder %s117, %s120
      %p129 = scmp.eq.s32.totalorder %s23, 1
      %p130 = por %p128, %p129
      %p131 = scmp.ne.s32.totalorder %s120, %s121
      %p132 = scmp.eq.s32.totalorder %s23, 0
      %p133 = por %p131, %p132
      %p134 = scmp.ne.s32.totalorder %s120, %s121
      %p135 = scmp.eq.s32.totalorder %s24, 1
      %p136 = por %p134, %p135
      %p138 = scmp.ne.s32.totalorder %s121, %s137
      %p139 = scmp.eq.s32.totalorder %s24, 0
      %p140 = por %p138, %p139
      %p141 = scmp.le.s32.totalorder 1, %s18
      %p142 = scmp.lt.s32.totalorder %s18, 3
      %p143 = pnand %p141, %p142
      %p144 = pneg %p143
      // Predicated region
      $region9: #{tpu_custom_call.1} parent=5 // pred_check
        _
      $region10: #{tpu_custom_call.1} parent=5 // pred_check_branch
        %146 = sbr.rel (%p143) target = $region12
      $region11: #{tpu_custom_call.1} parent=5 // pred_region
        %s147 = ssub.s32 %s18, 1
        // Predicated region
        $region13: #{tpu_custom_call.1} parent=11 // pred_check
          %p148 = pneg %p65
        $region14: #{tpu_custom_call.1} parent=11 // pred_check_branch
          %150 = sbr.rel (%p148) target = $region16
        $region15: #{tpu_custom_call.1} parent=11 // pred_region
          %s152 = ssub.s32 16, 16
          %153 = vsyncadd [#allocation6], %s152
          %s155 = sshll.u32 [#allocation5], 4
          %s156 = int_to_ptr.vmem [resolvable:$true] %s155
          %158 = dma.hbm_to_vmem [thread:$0]  %s1, 16, %s156, [#allocation6]
        $region16: #{tpu_custom_call.1} parent=11 // pred_fallthru
          _
        // Predicated region
        $region17: #{tpu_custom_call.1} parent=11 // pred_check
          %p159 = pneg %p86
        $region18: #{tpu_custom_call.1} parent=11 // pred_check_branch
          %161 = sbr.rel (%p159) target = $region20
        $region19: #{tpu_custom_call.1} parent=11 // pred_region
          %s163 = ssub.s32 16, 16
          %164 = vsyncadd [#allocation6], %s163
          %s166 = sshll.u32 [#allocation7], 4
          %s167 = int_to_ptr.vmem [resolvable:$true] %s166
          %169 = dma.hbm_to_vmem [thread:$0]  %s2, 16, %s167, [#allocation6]
        $region20: #{tpu_custom_call.1} parent=11 // pred_fallthru
          _
        // Predicated region
        $region21: #{tpu_custom_call.1} parent=11 // pred_check
          %p170 = pneg %p107
        $region22: #{tpu_custom_call.1} parent=11 // pred_check_branch
          %172 = sbr.rel (%p170) target = $region24
        $region23: #{tpu_custom_call.1} parent=11 // pred_region
          %s174 = ssub.s32 3072, 3072
          %175 = vsyncadd [#allocation9], %s174
          %s176 = sshll.u32 [#allocation8], 4
          %s177 = int_to_ptr.vmem [resolvable:$true] %s176
          %182 = dma.hbm_to_vmem [thread:$0]  %s3, 3072, %s177, [#allocation9], 192, 192, 12
        $region24: #{tpu_custom_call.1} parent=11 // pred_fallthru
          _
      $region12: #{tpu_custom_call.1} parent=5 // pred_fallthru
        _
      %p183 = scmp.lt.s32.totalorder %s18, 2
      // Predicated region
      $region25: #{tpu_custom_call.1} parent=5 // pred_check
        %p184 = pneg %p183
      $region26: #{tpu_custom_call.1} parent=5 // pred_check_branch
        %186 = sbr.rel (%p184) target = $region28
      $region27: #{tpu_custom_call.1} parent=5 // pred_region
        // Predicated region
        $region29: #{tpu_custom_call.1} parent=27 // pred_check
          %p187 = pneg %p38
        $region30: #{tpu_custom_call.1} parent=27 // pred_check_branch
          %189 = sbr.rel (%p187) target = $region32
        $region31: #{tpu_custom_call.1} parent=27 // pred_region
          %s190 = sand.u32 %s28, 1
          %s191 = scalar_lea.sflag [#allocation3], %s190
          %s192 = sand.u32 %s28, 1
          %s193 = smul.addr %s192, 16
          %s194 = scalar_lea.vmem [#allocation2], %s193
          %s195 = smul.u32 2, %s18
          %s197 = ssub.s32 256, 256
          %198 = vsyncadd %s191, %s197
          %s199 = smul.addr %s195, 128
          %s200 = scalar_lea.hbm %s0, %s199
          %s201 = sshll.u32 %s194, 4
          %s202 = int_to_ptr.vmem [resolvable:$true] %s201
          %207 = dma.hbm_to_vmem [thread:$0]  %s200, 256, %s202, %s191, 128, 128, 8
        $region32: #{tpu_custom_call.1} parent=27 // pred_fallthru
          _
      $region28: #{tpu_custom_call.1} parent=5 // pred_fallthru
        _
      %p208 = scmp.le.s32.totalorder 1, %s18
      %p209 = scmp.lt.s32.totalorder %s18, 3
      %p210 = pnand %p208, %p209
      %p211 = pneg %p210
      // Predicated region
      $region33: #{tpu_custom_call.1} parent=5 // pred_check
        _
      $region34: #{tpu_custom_call.1} parent=5 // pred_check_branch
        %213 = sbr.rel (%p210) target = $region36
      $region35: #{tpu_custom_call.1} parent=5 // pred_region
        %s214 = ssub.s32 %s18, 1
        %s215 = sand.u32 %s31, 1
        %s216 = scalar_lea.sflag [#allocation3], %s215
        %s217 = sand.u32 %s31, 1
        %s218 = smul.addr %s217, 16
        %s219 = scalar_lea.vmem [#allocation2], %s218
        // Predicated region
        $region37: #{tpu_custom_call.1} parent=35 // pred_check
          %p220 = pneg %p44
        $region38: #{tpu_custom_call.1} parent=35 // pred_check_branch
          %222 = sbr.rel (%p220) target = $region40
        $region39: #{tpu_custom_call.1} parent=35 // pred_region
          %223 = dma.done %s216, 256
        $region40: #{tpu_custom_call.1} parent=35 // pred_fallthru
          _
        // Predicated region
        $region41: #{tpu_custom_call.1} parent=35 // pred_check
          %p224 = pneg %p65
        $region42: #{tpu_custom_call.1} parent=35 // pred_check_branch
          %226 = sbr.rel (%p224) target = $region44
        $region43: #{tpu_custom_call.1} parent=35 // pred_region
          %227 = dma.done [#allocation6], 16
        $region44: #{tpu_custom_call.1} parent=35 // pred_fallthru
          _
        // Predicated region
        $region45: #{tpu_custom_call.1} parent=35 // pred_check
          %p228 = pneg %p86
        $region46: #{tpu_custom_call.1} parent=35 // pred_check_branch
          %230 = sbr.rel (%p228) target = $region48
        $region47: #{tpu_custom_call.1} parent=35 // pred_region
          %231 = dma.done [#allocation6], 16
        $region48: #{tpu_custom_call.1} parent=35 // pred_fallthru
          _
        // Predicated region
        $region49: #{tpu_custom_call.1} parent=35 // pred_check
          %p232 = pneg %p107
        $region50: #{tpu_custom_call.1} parent=35 // pred_check_branch
          %234 = sbr.rel (%p232) target = $region52
        $region51: #{tpu_custom_call.1} parent=35 // pred_region
          %235 = dma.done [#allocation9], 3072
        $region52: #{tpu_custom_call.1} parent=35 // pred_fallthru
          _
        %s236 = sand.u32 %s31, 1
        %s237 = scalar_lea.sflag [#allocation3], %s236
        %s238 = sand.u32 %s31, 1
        %s239 = smul.addr %s238, 16
        %s240 = scalar_lea.vmem [#allocation2], %s239
        %p241 = pneg %p44
        %p242 = pneg %p41
        %p243 = pneg %p65
        %p244 = pneg %p62
        %p245 = pneg %p86
        %p246 = pneg %p83
        %p247 = pneg %p107
        %p248 = pneg %p104
        %p249 = pneg %p133
        %p250 = pneg %p130
        %s251 = sand.u32 %s120, 1
        %s252 = scalar_lea.sflag [#allocation4], %s251
        %s253 = sand.u32 %s120, 1
        %s254 = smul.addr %s253, 24
        %s255 = scalar_lea.vmem [#allocation10], %s254
        %s256 = smul.u32 2, %s23
        %s257 = smul.u32 2, %s23
        %v259 = vld [vmem:[%s219] sm:$0xff]
        %v260 = vld [vmem:[%s219 + $0x8] sm:$0xff]
        %v261 = vld [vmem:[#allocation5] sm:$0x1]
        %v262 = vld [vmem:[#allocation7] sm:$0x1]
        %263 = vadd.xlane.f32.xlu0 %v259
        %v264 = vpop.xlane.xlu0 %263
        %265 = vadd.xlane.f32.xlu0 %v260
        %v266 = vpop.xlane.xlu0 %265
        %v267 = vrcp.pop 128.0
        %v268 = vmul.f32 %v264, %v267
        %v269 = vmul.f32 %v266, %v267
        %v270 = vsub.f32 %v259, %v268
        %v271 = vsub.f32 %v260, %v269
        %v272 = vmul.f32 %v270, %v270
        %v273 = vmul.f32 %v271, %v271
        %274 = vadd.xlane.f32.xlu0 %v272
        %v275 = vpop.xlane.xlu0 %274
        %276 = vadd.xlane.f32.xlu0 %v273
        %v277 = vpop.xlane.xlu0 %276
        %v278 = vmul.f32 %v275, %v267
        %v279 = vmul.f32 %v277, %v267
        %v280 = vadd.f32 %v278, 1e-05
        %v281 = vadd.f32 %v279, 1e-05
        %v282 = vrsqrt.pop %v280
        %v283 = vrsqrt.pop %v281
        %v284 = vmul.f32 %v270, %v282
        %v285 = vmul.f32 %v271, %v283
        %v287 = vlaneseq
        %v288 = vshrl.u32 %v287, 7
        %v289 = vsub.s32 0, %v288
        %v290 = vrot.slane %v261, %v289
        %v292 = vmul.f32 %v284, %v290
        %v293 = vmul.f32 %v285, %v290
        %v295 = vlaneseq
        %v296 = vshrl.u32 %v295, 7
        %v297 = vsub.s32 0, %v296
        %v298 = vrot.slane %v262, %v297
        %v300 = vadd.f32 %v292, %v298
        %v301 = vadd.f32 %v293, %v298
        %v302 = vpack.c.bf16 %v301, %v300
        %v303 = vld [vmem:[#allocation8] sm:$0xff]
        %v304 = vld [vmem:[#allocation8 + $0x8] sm:$0xf]
        %v305 = vld [vmem:[#allocation8 + $0xc] sm:$0xff]
        %v306 = vld [vmem:[#allocation8 + $0x14] sm:$0xf]
        %v307 = vld [vmem:[#allocation8 + $0x18] sm:$0xff]
        %v308 = vld [vmem:[#allocation8 + $0x20] sm:$0xf]
        %v309 = vld [vmem:[#allocation8 + $0x24] sm:$0xff]
        %v310 = vld [vmem:[#allocation8 + $0x2c] sm:$0xf]
        %v311 = vld [vmem:[#allocation8 + $0x30] sm:$0xff]
        %v312 = vld [vmem:[#allocation8 + $0x38] sm:$0xf]
        %v313 = vld [vmem:[#allocation8 + $0x3c] sm:$0xff]
        %v314 = vld [vmem:[#allocation8 + $0x44] sm:$0xf]
        %v315 = vld [vmem:[#allocation8 + $0x48] sm:$0xff]
        %v316 = vld [vmem:[#allocation8 + $0x50] sm:$0xf]
        %v317 = vld [vmem:[#allocation8 + $0x54] sm:$0xff]
        %v318 = vld [vmem:[#allocation8 + $0x5c] sm:$0xf]
        %v319 = vld [vmem:[#allocation8 + $0x60] sm:$0xff]
        %v320 = vld [vmem:[#allocation8 + $0x68] sm:$0xf]
        %v321 = vld [vmem:[#allocation8 + $0x6c] sm:$0xff]
        %v322 = vld [vmem:[#allocation8 + $0x74] sm:$0xf]
        %v323 = vld [vmem:[#allocation8 + $0x78] sm:$0xff]
        %v324 = vld [vmem:[#allocation8 + $0x80] sm:$0xf]
        %v325 = vld [vmem:[#allocation8 + $0x84] sm:$0xff]
        %v326 = vld [vmem:[#allocation8 + $0x8c] sm:$0xf]
        %v327 = vld [vmem:[#allocation8 + $0x90] sm:$0xff]
        %v328 = vld [vmem:[#allocation8 + $0x98] sm:$0xf]
        %v329 = vld [vmem:[#allocation8 + $0x9c] sm:$0xff]
        %v330 = vld [vmem:[#allocation8 + $0xa4] sm:$0xf]
        %v331 = vld [vmem:[#allocation8 + $0xa8] sm:$0xff]
        %v332 = vld [vmem:[#allocation8 + $0xb0] sm:$0xf]
        %v333 = vld [vmem:[#allocation8 + $0xb4] sm:$0xff]
        %v334 = vld [vmem:[#allocation8 + $0xbc] sm:$0xf]
        %v367 = vunpack.c.l.b16 %v303
        %v368 = vunpack.c.h.b16 %v303
        %v369 = vunpack.c.l.b16 %v304
        %v370 = vunpack.c.l.b16 %v305
        %v371 = vunpack.c.h.b16 %v305
        %v372 = vunpack.c.l.b16 %v306
        %v373 = vunpack.c.l.b16 %v307
        %v374 = vunpack.c.h.b16 %v307
        %v375 = vunpack.c.l.b16 %v308
        %v376 = vunpack.c.l.b16 %v309
        %v377 = vunpack.c.h.b16 %v309
        %v378 = vunpack.c.l.b16 %v310
        %v379 = vunpack.c.l.b16 %v311
        %v380 = vunpack.c.h.b16 %v311
        %v381 = vunpack.c.l.b16 %v312
        %v382 = vunpack.c.l.b16 %v313
        %v383 = vunpack.c.h.b16 %v313
        %v384 = vunpack.c.l.b16 %v314
        %v385 = vunpack.c.l.b16 %v315
        %v386 = vunpack.c.h.b16 %v315
        %v387 = vunpack.c.l.b16 %v316
        %v388 = vunpack.c.l.b16 %v317
        %v389 = vunpack.c.h.b16 %v317
        %v390 = vunpack.c.l.b16 %v318
        %v391 = vunpack.c.l.b16 %v319
        %v392 = vunpack.c.h.b16 %v319
        %v393 = vunpack.c.l.b16 %v320
        %v394 = vunpack.c.l.b16 %v321
        %v395 = vunpack.c.h.b16 %v321
        %v396 = vunpack.c.l.b16 %v322
        %v397 = vunpack.c.l.b16 %v323
        %v398 = vunpack.c.h.b16 %v323
        %v399 = vunpack.c.l.b16 %v324
        %v400 = vunpack.c.l.b16 %v325
        %v401 = vunpack.c.h.b16 %v325
        %v402 = vunpack.c.l.b16 %v326
        %v403 = vunpack.c.l.b16 %v327
        %v404 = vunpack.c.h.b16 %v327
        %v405 = vunpack.c.l.b16 %v328
        %v406 = vunpack.c.l.b16 %v329
        %v407 = vunpack.c.h.b16 %v329
        %v408 = vunpack.c.l.b16 %v330
        %v409 = vunpack.c.l.b16 %v331
        %v410 = vunpack.c.h.b16 %v331
        %v411 = vunpack.c.l.b16 %v332
        %v412 = vunpack.c.l.b16 %v333
        %v413 = vunpack.c.h.b16 %v333
        %v414 = vunpack.c.l.b16 %v334
        %v415 = vpack.c.b16 %v370, %v367
        %v416 = vpack.c.b16 %v371, %v368
        %v417 = vpack.c.b16 %v372, %v369
        %v418 = vpack.c.b16 %v376, %v373
        %v419 = vpack.c.b16 %v377, %v374
        %v420 = vpack.c.b16 %v378, %v375
        %v421 = vpack.c.b16 %v382, %v379
        %v422 = vpack.c.b16 %v383, %v380
        %v423 = vpack.c.b16 %v384, %v381
        %v424 = vpack.c.b16 %v388, %v385
        %v425 = vpack.c.b16 %v389, %v386
        %v426 = vpack.c.b16 %v390, %v387
        %v427 = vpack.c.b16 %v394, %v391
        %v428 = vpack.c.b16 %v395, %v392
        %v429 = vpack.c.b16 %v396, %v393
        %v430 = vpack.c.b16 %v400, %v397
        %v431 = vpack.c.b16 %v401, %v398
        %v432 = vpack.c.b16 %v402, %v399
        %v433 = vpack.c.b16 %v406, %v403
        %v434 = vpack.c.b16 %v407, %v404
        %v435 = vpack.c.b16 %v408, %v405
        %v436 = vpack.c.b16 %v412, %v409
        %v437 = vpack.c.b16 %v413, %v410
        %v438 = vpack.c.b16 %v414, %v411
        %463 = vmatprep.subr.bf16.mxu0 %v416
        %464 = vmatpush1.bf16.msra.mxu0 %v415
        %465 = vmatprep.subr.bf16.mxu0 %v419
        %466 = vmatpush1.bf16.msra.mxu0 %v418
        %467 = vmatprep.subr.bf16.mxu0 %v422
        %468 = vmatpush1.bf16.msra.mxu0 %v421
        %469 = vmatprep.subr.bf16.mxu0 %v425
        %470 = vmatpush1.bf16.msra.mxu0 %v424
        %471 = vmatprep.subr.bf16.mxu0 %v428
        %472 = vmatpush1.bf16.msra.mxu0 %v427
        %473 = vmatprep.subr.bf16.mxu0 %v431
        %474 = vmatpush1.bf16.msra.mxu0 %v430
        %475 = vmatprep.subr.bf16.mxu0 %v434
        %476 = vmatpush1.bf16.msra.mxu0 %v433
        %477 = vmatprep.subr.bf16.mxu0 %v437
        %478 = vmatpush1.bf16.msra.mxu0 %v436
        %479 = vmatprep.subr.bf16.mxu0 0
        %480 = vmatpush1.bf16.msra.mxu0 0
        %481 = vmatprep.subr.bf16.mxu0 0
        %482 = vmatpush1.bf16.msra.mxu0 0
        %483 = vmatprep.subr.bf16.mxu0 0
        %484 = vmatpush1.bf16.msra.mxu0 0
        %485 = vmatprep.subr.bf16.mxu0 0
        %486 = vmatpush1.bf16.msra.mxu0 0
        %487 = vmatprep.subr.bf16.mxu0 0
        %488 = vmatpush1.bf16.msra.mxu0 0
        %489 = vmatprep.subr.bf16.mxu0 0
        %490 = vmatpush1.bf16.msra.mxu0 0
        %491 = vmatprep.subr.bf16.mxu0 0
        %492 = vmatpush1.bf16.msra.mxu0 0
        %493 = vmatprep.subr.bf16.mxu0 0
        %494 = vmatpush1.bf16.msra.mxu0 0
        %495 = vmatprep.mubr.bf16.mxu0 0
        %496 = vmatmul.mubr.bf16.gmra.mrb[0].mxu0 %v302
        %v497 = vpop.f32.mrb[0].mxu0
        %v498 = vadd.f32 0.0, %v497
        %v499 = vpop.f32.mrb[0].mxu0
        %v500 = vadd.f32 0.0, %v499
        %v501 = vpop.f32.mrb[0].mxu0
        %v502 = vadd.f32 0.0, %v501
        %v503 = vpop.f32.mrb[0].mxu0
        %v504 = vadd.f32 0.0, %v503
        %505 = vdwg.mxu0
        %506 = vmatprep.subr.bf16.mxu0 0
        %507 = vmatpush1.bf16.msra.mxu0 %v417
        %508 = vmatprep.subr.bf16.mxu0 0
        %509 = vmatpush1.bf16.msra.mxu0 %v420
        %510 = vmatprep.subr.bf16.mxu0 0
        %511 = vmatpush1.bf16.msra.mxu0 %v423
        %512 = vmatprep.subr.bf16.mxu0 0
        %513 = vmatpush1.bf16.msra.mxu0 %v426
        %514 = vmatprep.subr.bf16.mxu0 0
        %515 = vmatpush1.bf16.msra.mxu0 %v429
        %516 = vmatprep.subr.bf16.mxu0 0
        %517 = vmatpush1.bf16.msra.mxu0 %v432
        %518 = vmatprep.subr.bf16.mxu0 0
        %519 = vmatpush1.bf16.msra.mxu0 %v435
        %520 = vmatprep.subr.bf16.mxu0 0
        %521 = vmatpush1.bf16.msra.mxu0 %v438
        %522 = vmatprep.subr.bf16.mxu0 0
        %523 = vmatpush1.bf16.msra.mxu0 0
        %524 = vmatprep.subr.bf16.mxu0 0
        %525 = vmatpush1.bf16.msra.mxu0 0
        %526 = vmatprep.subr.bf16.mxu0 0
        %527 = vmatpush1.bf16.msra.mxu0 0
        %528 = vmatprep.subr.bf16.mxu0 0
        %529 = vmatpush1.bf16.msra.mxu0 0
        %530 = vmatprep.subr.bf16.mxu0 0
        %531 = vmatpush1.bf16.msra.mxu0 0
        %532 = vmatprep.subr.bf16.mxu0 0
        %533 = vmatpush1.bf16.msra.mxu0 0
        %534 = vmatprep.subr.bf16.mxu0 0
        %535 = vmatpush1.bf16.msra.mxu0 0
        %536 = vmatprep.subr.bf16.mxu0 0
        %537 = vmatpush1.bf16.msra.mxu0 0
        %538 = vmatprep.mubr.bf16.mxu0 0
        %539 = vmatmul.mubr.bf16.gmra.mrb[0].mxu0 %v302
        %v540 = vpop.f32.mrb[0].mxu0
        %v541 = vadd.f32 0.0, %v540
        %v542 = vpop.f32.mrb[0].mxu0
        %v543 = vpop.f32.mrb[0].mxu0
        %v544 = vadd.f32 0.0, %v543
        %v545 = vpop.f32.mrb[0].mxu0
        %546 = vdwg.mxu0
        %v547 = vpack.c.bf16 %v502, %v498
        %v548 = vpack.c.bf16 %v504, %v500
        %v549 = vpack.c.bf16 %v544, %v541
        %v553 = vunpack.c.l.b16 %v547
        %v554 = vunpack.c.l.b16 %v548
        %v555 = vunpack.c.l.b16 %v549
        %v556 = vunpack.c.h.b16 %v547
        %v557 = vunpack.c.h.b16 %v548
        %v558 = vunpack.c.h.b16 %v549
        %v559 = vpack.c.b16 %v554, %v553
        %v560 = vpack.c.b16 %v555, %v555
        %v561 = vpack.c.b16 %v557, %v556
        %v562 = vpack.c.b16 %v558, %v558
        %567 = vst [vmem:[%s255] sm:$0xff] %v559
        %568 = vst [vmem:[%s255 + $0x8] sm:$0xf] %v560
        %569 = vst [vmem:[%s255 + $0xc] sm:$0xff] %v561
        %570 = vst [vmem:[%s255 + $0x14] sm:$0xf] %v562
        %s571 = sand.u32 %s120, 1
        %s572 = scalar_lea.sflag [#allocation4], %s571
        %s573 = sand.u32 %s120, 1
        %s574 = smul.addr %s573, 24
        %s575 = scalar_lea.vmem [#allocation10], %s574
        // Predicated region
        $region53: #{tpu_custom_call.1} parent=35 // pred_check
          %p576 = pneg %p130
        $region54: #{tpu_custom_call.1} parent=35 // pred_check_branch
          %578 = sbr.rel (%p576) target = $region56
        $region55: #{tpu_custom_call.1} parent=35 // pred_region
          %s579 = smul.u32 2, %s23
          %s581 = ssub.s32 384, 384
          %582 = vsyncadd %s572, %s581
          %s583 = smul.addr %s579, 3
          %s584 = smul.addr %s583, 64
          %s585 = scalar_lea.hbm %s4, %s584
          %s586 = sshll.u32 %s575, 4
          %s587 = int_to_ptr.vmem [resolvable:$true] %s586
          %592 = dma.vmem_to_hbm [thread:$0]  %s587, 384, %s585, %s572, 192, 192, 12
        $region56: #{tpu_custom_call.1} parent=35 // pred_fallthru
          _
      $region36: #{tpu_custom_call.1} parent=5 // pred_fallthru
        _
      %p593 = scmp.le.s32.totalorder 2, %s18
      // Predicated region
      $region57: #{tpu_custom_call.1} parent=5 // pred_check
        %p594 = pneg %p593
      $region58: #{tpu_custom_call.1} parent=5 // pred_check_branch
        %596 = sbr.rel (%p594) target = $region60
      $region59: #{tpu_custom_call.1} parent=5 // pred_region
        %s597 = ssub.s32 %s18, 2
        // Predicated region
        $region61: #{tpu_custom_call.1} parent=59 // pred_check
          %p598 = pneg %p136
        $region62: #{tpu_custom_call.1} parent=59 // pred_check_branch
          %600 = sbr.rel (%p598) target = $region64
        $region63: #{tpu_custom_call.1} parent=59 // pred_region
          %s601 = sand.u32 %s121, 1
          %s602 = scalar_lea.sflag [#allocation4], %s601
          %s603 = sand.u32 %s121, 1
          %s604 = smul.addr %s603, 24
          %s605 = scalar_lea.vmem [#allocation10], %s604
          %606 = dma.done %s602, 384
        $region64: #{tpu_custom_call.1} parent=59 // pred_fallthru
          _
      $region60: #{tpu_custom_call.1} parent=5 // pred_fallthru
        _
    $region6: #{tpu_custom_call.1} parent=1 // loop_footer
      %s22 = sadd.s32 1, %s18
    $region7: #{tpu_custom_call.1} parent=1 // loop_footer_branch
      %17 = sbr.rel target = $region3
    $region8: #{tpu_custom_call.1} parent=1 // loop_exit
      _
    %607 = vsyncpa [#allocation3], 1
    %s608 = scalar_lea.sflag [#allocation3], 1
    %609 = vsyncpa %s608, 1
    %610 = vsyncpa [#allocation6], 1
    %611 = vsyncpa [#allocation9], 1
    %612 = vsyncpa [#allocation4], 1
    %s613 = scalar_lea.sflag [#allocation4], 1
    %614 = vsyncpa %s613, 1

</llo_original>
